<compile_context>
chip_gen: v6e
topology: v6e:2x2x1
jax: 0.10.0
libtpu: 0.0.40
codegen_flags: <defaults>
</compile_context>

<pallas_src>
import functools

import jax
import jax.numpy as jnp
from jax import lax
from jax.experimental import pallas as pl
from jax.experimental.pallas import tpu as pltpu


def _proto_center_attention_kernel(x_ref, w_att_ref, w_fc_ref, b_fc_ref,
                                   out_ref, scores_ref, *,
                                   scores_lane_major: bool):
    TB, N, D = x_ref.shape

    w_att = w_att_ref[...].astype(jnp.float32)                        # (1, D)
    lane = lax.broadcasted_iota(jnp.int32, (TB, N), 1)                 # token id per lane

    # ---- Pass 1: attention logits ------------------------------------------
    # N is small & static, so this Python loop fully unrolls at trace time.
    # Each iteration re-slices a (TB, D) token slab from the VMEM ref; the
    # live register set stays ~(TB, D) instead of the whole (TB, N, D) block.
    logits = jnp.zeros((TB, N), dtype=jnp.float32)
    for n in range(N):
        xn = x_ref[:, n, :].astype(jnp.float32)                        # (TB, D)
        col = jnp.sum(xn * w_att, axis=-1, keepdims=True)              # (TB, 1)
        logits = jnp.where(lane == n, col, logits)                     # place column n

    # ---- Softmax over tokens (PyTorch Softmax(dim=1)) ----------------------
    # The scalar attention bias is dropped: softmax over N is invariant to a
    # per-batch scalar shift, so neither scores nor output change.
    m = jnp.max(logits, axis=-1, keepdims=True)                        # (TB, 1)
    e = jnp.exp(logits - m)                                            # (TB, N)
    denom = jnp.sum(e, axis=-1, keepdims=True)                         # (TB, 1)
    scores = e * pl.reciprocal(denom, approx=True)                     # (TB, N) f32

    if scores_lane_major:
        scores_ref[...] = scores.T.astype(scores_ref.dtype)            # (N, TB) lane-dense
    else:
        scores_ref[...] = scores.astype(scores_ref.dtype)              # (TB, N)

    # ---- Pass 2: weighted token sum on the VPU ------------------------------
    # Broadcast multiply-accumulate (f32) instead of an M=1 batched matmul.
    agg = jnp.zeros((TB, D), dtype=jnp.float32)
    for n in range(N):
        xn = x_ref[:, n, :].astype(jnp.float32)                        # (TB, D)
        w_n = jnp.sum(jnp.where(lane == n, scores, 0.0),
                      axis=-1, keepdims=True)                          # (TB, 1)
        agg = agg + w_n * xn

    # ---- Final Linear(D -> D) on the MXU ------------------------------------
    # Contract agg axis 1 against w_fc's input axis (axis 1), i.e. agg @ w_fc^T,
    # without materializing a transposed weight copy in the wrapper.
    w_fc = w_fc_ref[...]                                               # (D_out, D_in)
    out = lax.dot_general(agg.astype(w_fc.dtype), w_fc,
                          dimension_numbers=(((1,), (1,)), ((), ())),
                          preferred_element_type=jnp.float32)          # (TB, D) f32
    out = out + b_fc_ref[...].astype(jnp.float32)
    out_ref[...] = out.astype(out_ref.dtype)


def proto_center_attention(x, w_att, b_att, w_fc, b_fc, *, matmul_dtype=None):
    """ProtoCenterAttention forward.

    x:     (B, N, D)
    w_att: (1, D)   nn.Linear(D, 1).weight
    b_att: (1,)     nn.Linear(D, 1).bias   (unused: softmax over N is shift-
                    invariant, so it changes neither scores nor output)
    w_fc:  (D, D)   nn.Linear(D, D).weight [out, in]
    b_fc:  (D,)     nn.Linear(D, D).bias
    matmul_dtype: optional operand dtype for the FC matmul (e.g. jnp.bfloat16
                  on v5e, whose MXU is bf16-native); accumulation stays f32.

    Returns (output (B, D) in x.dtype, attention_scores (B, N, 1) in float32),
    matching the PyTorch module.
    """
    del b_att
    B, N, D = x.shape
    dtype = x.dtype
    isz = jnp.dtype(dtype).itemsize

    # ---- Batch-tile selection ------------------------------------------------
    # Target an x block of ~4 MiB per grid step (amortizes grid overhead and
    # gives the FC matmul many MXU rows), capped at 512 rows.  TB is a multiple
    # of 8 (sublanes) with minimal batch padding; the grid is kept >= 2 when
    # B > 8 so both v7x TensorCores get work under "parallel" semantics.
    x_block_target = 4 << 20
    row_bytes = max(1, N * D * isz)
    tb_cap = max(8, min(512, (x_block_target // row_bytes) // 8 * 8))
    min_steps = 2 if B > 8 else 1
    steps = max(min_steps, pl.cdiv(B, tb_cap))
    tb = pl.cdiv(pl.cdiv(B, steps), 8) * 8
    b_pad = steps * tb

    # Lane-dense (N, TB) scores layout is only legal when TB % 128 == 0.
    scores_lane_major = (tb % 128 == 0)

    # ---- Operand preparation ---------------------------------------------------
    x_p = jnp.pad(x, ((0, b_pad - B), (0, 0), (0, 0))) if b_pad != B else x
    w_att_row = w_att.reshape(1, D).astype(jnp.float32)
    w_fc_c = w_fc if matmul_dtype is None else w_fc.astype(matmul_dtype)
    b_fc_2d = b_fc.reshape(1, D).astype(jnp.float32)
    fc_isz = jnp.dtype(w_fc_c.dtype).itemsize

    if scores_lane_major:
        scores_shape = (N, b_pad)
        scores_spec = pl.BlockSpec((N, tb), lambda b: (0, b))
    else:
        scores_shape = (b_pad, N)
        scores_spec = pl.BlockSpec((tb, N), lambda b: (b, 0))

    # ---- Explicit VMEM budget (v7x: 64 MiB physical / 32 MiB scoped default) ---
    # Resident weights have constant block indices (fetched once) but their
    # double buffers are still allocated, so they are counted here.
    est_vmem = (2 * tb * N * D * isz         # x block (double buffered)
                + 2 * D * D * fc_isz         # w_fc block
                + 2 * tb * D * isz           # output block
                + 2 * tb * N * 4             # scores block
                + 4 * D * 4 + 4096)          # w_att + b_fc + slack
    vmem_limit = int(min(48 << 20, max(32 << 20, int(est_vmem * 1.25))))

    kernel = functools.partial(_proto_center_attention_kernel,
                               scores_lane_major=scores_lane_major)

    out_p, scores_p = pl.pallas_call(
        kernel,
        out_shape=(
            jax.ShapeDtypeStruct((b_pad, D), dtype),
            jax.ShapeDtypeStruct(scores_shape, jnp.float32),
        ),
        grid_spec=pltpu.PrefetchScalarGridSpec(
            num_scalar_prefetch=0,
            grid=(b_pad // tb,),
            in_specs=[
                pl.BlockSpec((tb, N, D), lambda b: (b, 0, 0)),   # x
                pl.BlockSpec((1, D), lambda b: (0, 0)),          # w_att
                pl.BlockSpec((D, D), lambda b: (0, 0)),          # w_fc
                pl.BlockSpec((1, D), lambda b: (0, 0)),          # b_fc
            ],
            out_specs=[
                pl.BlockSpec((tb, D), lambda b: (b, 0)),         # output
                scores_spec,                                     # attention scores
            ],
        ),
        compiler_params=pltpu.CompilerParams(
            dimension_semantics=("parallel",),
            vmem_limit_bytes=vmem_limit,
        ),
    )(x_p, w_att_row, w_fc_c, b_fc_2d)

    out = out_p[:B]
    scores = (scores_p.T if scores_lane_major else scores_p)[:B]
    return out, scores.reshape(B, N, 1)


def _reference(x, w_att, b_att, w_fc, b_fc):
    logits = jnp.einsum("bnd,od->bno", x, w_att) + b_att          # (B, N, 1)
    scores = jax.nn.softmax(logits, axis=1)                       # softmax over N
    agg = jnp.sum(x * scores, axis=1)                             # (B, D)
    out = agg @ w_fc.T + b_fc                                     # (B, D)
    return out, scores


if __name__ == "__main__":
    B, N, D = 16, 8, 128
    key = jax.random.PRNGKey(0)
    kx, kwa, kba, kwf, kbf = jax.random.split(key, 5)

    x = jax.random.normal(kx, (B, N, D), dtype=jnp.float32)
    # Deterministic synthetic parameters (shapes per nn.Linear(D,1), nn.Linear(D,D)).
    w_att = jax.random.normal(kwa, (1, D), dtype=jnp.float32) * 0.1
    b_att = jax.random.normal(kba, (1,), dtype=jnp.float32) * 0.1
    w_fc = jax.random.normal(kwf, (D, D), dtype=jnp.float32) * 0.1
    b_fc = jax.random.normal(kbf, (D,), dtype=jnp.float32) * 0.1

    out, scores = proto_center_attention(x, w_att, b_att, w_fc, b_fc)
    out = jax.block_until_ready(out)
    scores = jax.block_until_ready(scores)

    out_exp, scores_exp = _reference(x, w_att, b_att, w_fc, b_fc)
    assert out.shape == (B, D) and scores.shape == (B, N, 1)
    # Tolerance loosened slightly for the approx (EUP) reciprocal in the softmax.
    assert jnp.allclose(out, out_exp, atol=2e-3, rtol=2e-3), "output mismatch"
    assert jnp.allclose(scores, scores_exp, atol=2e-3, rtol=2e-3), "scores mismatch"

    print("KERNEL_OK")
</pallas_src>

<mosaic_0001>
module attributes {stable_mosaic.version = 11 : i64} {
  func.func @_proto_center_attention_kernel(%arg0: i32, %arg1: memref<8x8x128xf32, #tpu.memory_space<vmem>>, %arg2: memref<1x128xf32, #tpu.memory_space<vmem>>, %arg3: memref<128x128xf32, #tpu.memory_space<vmem>>, %arg4: memref<1x128xf32, #tpu.memory_space<vmem>>, %arg5: memref<8x128xf32, #tpu.memory_space<vmem>>, %arg6: memref<8x8xf32, #tpu.memory_space<vmem>>) attributes {dimension_semantics = [#tpu.dimension_semantics<parallel>], iteration_bounds = array<i64: 2>, scalar_prefetch = 0 : i64, scratch_operands = 0 : i64, tpu.core_type = #tpu.core_type<tc>, window_params = [{transform_indices = @transform_0, window_bounds = array<i64: 8, 8, 128>}, {pipeline_mode = #tpu.pipeline_mode<synchronous>, transform_indices = @transform_1, window_bounds = array<i64: 1, 128>}, {pipeline_mode = #tpu.pipeline_mode<synchronous>, transform_indices = @transform_2, window_bounds = array<i64: 128, 128>}, {pipeline_mode = #tpu.pipeline_mode<synchronous>, transform_indices = @transform_3, window_bounds = array<i64: 1, 128>}, {transform_indices = @transform_4, window_bounds = array<i64: 8, 128>}, {transform_indices = @transform_5, window_bounds = array<i64: 8, 8>}]} {
    %c0 = arith.constant 0 : index
    %c0_0 = arith.constant 0 : index
    %0 = vector.load %arg2[%c0, %c0_0] : memref<1x128xf32, #tpu.memory_space<vmem>>, vector<1x128xf32>
    %1 = tpu.iota {dimensions = array<i32: 1>} : vector<8x8xi32>
    %cst = arith.constant 0.000000e+00 : f32
    %2 = vector.broadcast %cst : f32 to vector<8x8xf32>
    %c0_1 = arith.constant 0 : index
    %c0_2 = arith.constant 0 : index
    %c0_3 = arith.constant 0 : index
    %3 = vector.load %arg1[%c0_1, %c0_2, %c0_3] : memref<8x8x128xf32, #tpu.memory_space<vmem>>, vector<8x1x128xf32>
    %4 = vector.shape_cast %3 : vector<8x1x128xf32> to vector<8x128xf32>
    %5 = vector.broadcast %0 : vector<1x128xf32> to vector<8x128xf32>
    %6 = arith.mulf %4, %5 : vector<8x128xf32>
    %cst_4 = arith.constant dense<0.000000e+00> : vector<8xf32>
    %7 = vector.multi_reduction <add>, %6, %cst_4 [1] : vector<8x128xf32> to vector<8xf32>
    %8 = vector.shape_cast %7 : vector<8xf32> to vector<8x1xf32>
    %c0_i32 = arith.constant 0 : i32
    %9 = vector.broadcast %c0_i32 : i32 to vector<8x8xi32>
    %10 = arith.cmpi eq, %1, %9 : vector<8x8xi32>
    %11 = vector.shape_cast %8 : vector<8x1xf32> to vector<8x1xf32>
    %12 = vector.broadcast %11 : vector<8x1xf32> to vector<8x8xf32>
    %13 = arith.select %10, %12, %2 : vector<8x8xi1>, vector<8x8xf32>
    %c0_5 = arith.constant 0 : index
    %c1 = arith.constant 1 : index
    %c0_6 = arith.constant 0 : index
    %14 = vector.load %arg1[%c0_5, %c1, %c0_6] : memref<8x8x128xf32, #tpu.memory_space<vmem>>, vector<8x1x128xf32>
    %15 = vector.shape_cast %14 : vector<8x1x128xf32> to vector<8x128xf32>
    %16 = vector.broadcast %0 : vector<1x128xf32> to vector<8x128xf32>
    %17 = arith.mulf %15, %16 : vector<8x128xf32>
    %cst_7 = arith.constant dense<0.000000e+00> : vector<8xf32>
    %18 = vector.multi_reduction <add>, %17, %cst_7 [1] : vector<8x128xf32> to vector<8xf32>
    %19 = vector.shape_cast %18 : vector<8xf32> to vector<8x1xf32>
    %c1_i32 = arith.constant 1 : i32
    %20 = vector.broadcast %c1_i32 : i32 to vector<8x8xi32>
    %21 = arith.cmpi eq, %1, %20 : vector<8x8xi32>
    %22 = vector.shape_cast %19 : vector<8x1xf32> to vector<8x1xf32>
    %23 = vector.broadcast %22 : vector<8x1xf32> to vector<8x8xf32>
    %24 = arith.select %21, %23, %13 : vector<8x8xi1>, vector<8x8xf32>
    %c0_8 = arith.constant 0 : index
    %c2 = arith.constant 2 : index
    %c0_9 = arith.constant 0 : index
    %25 = vector.load %arg1[%c0_8, %c2, %c0_9] : memref<8x8x128xf32, #tpu.memory_space<vmem>>, vector<8x1x128xf32>
    %26 = vector.shape_cast %25 : vector<8x1x128xf32> to vector<8x128xf32>
    %27 = vector.broadcast %0 : vector<1x128xf32> to vector<8x128xf32>
    %28 = arith.mulf %26, %27 : vector<8x128xf32>
    %cst_10 = arith.constant dense<0.000000e+00> : vector<8xf32>
    %29 = vector.multi_reduction <add>, %28, %cst_10 [1] : vector<8x128xf32> to vector<8xf32>
    %30 = vector.shape_cast %29 : vector<8xf32> to vector<8x1xf32>
    %c2_i32 = arith.constant 2 : i32
    %31 = vector.broadcast %c2_i32 : i32 to vector<8x8xi32>
    %32 = arith.cmpi eq, %1, %31 : vector<8x8xi32>
    %33 = vector.shape_cast %30 : vector<8x1xf32> to vector<8x1xf32>
    %34 = vector.broadcast %33 : vector<8x1xf32> to vector<8x8xf32>
    %35 = arith.select %32, %34, %24 : vector<8x8xi1>, vector<8x8xf32>
    %c0_11 = arith.constant 0 : index
    %c3 = arith.constant 3 : index
    %c0_12 = arith.constant 0 : index
    %36 = vector.load %arg1[%c0_11, %c3, %c0_12] : memref<8x8x128xf32, #tpu.memory_space<vmem>>, vector<8x1x128xf32>
    %37 = vector.shape_cast %36 : vector<8x1x128xf32> to vector<8x128xf32>
    %38 = vector.broadcast %0 : vector<1x128xf32> to vector<8x128xf32>
    %39 = arith.mulf %37, %38 : vector<8x128xf32>
    %cst_13 = arith.constant dense<0.000000e+00> : vector<8xf32>
    %40 = vector.multi_reduction <add>, %39, %cst_13 [1] : vector<8x128xf32> to vector<8xf32>
    %41 = vector.shape_cast %40 : vector<8xf32> to vector<8x1xf32>
    %c3_i32 = arith.constant 3 : i32
    %42 = vector.broadcast %c3_i32 : i32 to vector<8x8xi32>
    %43 = arith.cmpi eq, %1, %42 : vector<8x8xi32>
    %44 = vector.shape_cast %41 : vector<8x1xf32> to vector<8x1xf32>
    %45 = vector.broadcast %44 : vector<8x1xf32> to vector<8x8xf32>
    %46 = arith.select %43, %45, %35 : vector<8x8xi1>, vector<8x8xf32>
    %c0_14 = arith.constant 0 : index
    %c4 = arith.constant 4 : index
    %c0_15 = arith.constant 0 : index
    %47 = vector.load %arg1[%c0_14, %c4, %c0_15] : memref<8x8x128xf32, #tpu.memory_space<vmem>>, vector<8x1x128xf32>
    %48 = vector.shape_cast %47 : vector<8x1x128xf32> to vector<8x128xf32>
    %49 = vector.broadcast %0 : vector<1x128xf32> to vector<8x128xf32>
    %50 = arith.mulf %48, %49 : vector<8x128xf32>
    %cst_16 = arith.constant dense<0.000000e+00> : vector<8xf32>
    %51 = vector.multi_reduction <add>, %50, %cst_16 [1] : vector<8x128xf32> to vector<8xf32>
    %52 = vector.shape_cast %51 : vector<8xf32> to vector<8x1xf32>
    %c4_i32 = arith.constant 4 : i32
    %53 = vector.broadcast %c4_i32 : i32 to vector<8x8xi32>
    %54 = arith.cmpi eq, %1, %53 : vector<8x8xi32>
    %55 = vector.shape_cast %52 : vector<8x1xf32> to vector<8x1xf32>
    %56 = vector.broadcast %55 : vector<8x1xf32> to vector<8x8xf32>
    %57 = arith.select %54, %56, %46 : vector<8x8xi1>, vector<8x8xf32>
    %c0_17 = arith.constant 0 : index
    %c5 = arith.constant 5 : index
    %c0_18 = arith.constant 0 : index
    %58 = vector.load %arg1[%c0_17, %c5, %c0_18] : memref<8x8x128xf32, #tpu.memory_space<vmem>>, vector<8x1x128xf32>
    %59 = vector.shape_cast %58 : vector<8x1x128xf32> to vector<8x128xf32>
    %60 = vector.broadcast %0 : vector<1x128xf32> to vector<8x128xf32>
    %61 = arith.mulf %59, %60 : vector<8x128xf32>
    %cst_19 = arith.constant dense<0.000000e+00> : vector<8xf32>
    %62 = vector.multi_reduction <add>, %61, %cst_19 [1] : vector<8x128xf32> to vector<8xf32>
    %63 = vector.shape_cast %62 : vector<8xf32> to vector<8x1xf32>
    %c5_i32 = arith.constant 5 : i32
    %64 = vector.broadcast %c5_i32 : i32 to vector<8x8xi32>
    %65 = arith.cmpi eq, %1, %64 : vector<8x8xi32>
    %66 = vector.shape_cast %63 : vector<8x1xf32> to vector<8x1xf32>
    %67 = vector.broadcast %66 : vector<8x1xf32> to vector<8x8xf32>
    %68 = arith.select %65, %67, %57 : vector<8x8xi1>, vector<8x8xf32>
    %c0_20 = arith.constant 0 : index
    %c6 = arith.constant 6 : index
    %c0_21 = arith.constant 0 : index
    %69 = vector.load %arg1[%c0_20, %c6, %c0_21] : memref<8x8x128xf32, #tpu.memory_space<vmem>>, vector<8x1x128xf32>
    %70 = vector.shape_cast %69 : vector<8x1x128xf32> to vector<8x128xf32>
    %71 = vector.broadcast %0 : vector<1x128xf32> to vector<8x128xf32>
    %72 = arith.mulf %70, %71 : vector<8x128xf32>
    %cst_22 = arith.constant dense<0.000000e+00> : vector<8xf32>
    %73 = vector.multi_reduction <add>, %72, %cst_22 [1] : vector<8x128xf32> to vector<8xf32>
    %74 = vector.shape_cast %73 : vector<8xf32> to vector<8x1xf32>
    %c6_i32 = arith.constant 6 : i32
    %75 = vector.broadcast %c6_i32 : i32 to vector<8x8xi32>
    %76 = arith.cmpi eq, %1, %75 : vector<8x8xi32>
    %77 = vector.shape_cast %74 : vector<8x1xf32> to vector<8x1xf32>
    %78 = vector.broadcast %77 : vector<8x1xf32> to vector<8x8xf32>
    %79 = arith.select %76, %78, %68 : vector<8x8xi1>, vector<8x8xf32>
    %c0_23 = arith.constant 0 : index
    %c7 = arith.constant 7 : index
    %c0_24 = arith.constant 0 : index
    %80 = vector.load %arg1[%c0_23, %c7, %c0_24] : memref<8x8x128xf32, #tpu.memory_space<vmem>>, vector<8x1x128xf32>
    %81 = vector.shape_cast %80 : vector<8x1x128xf32> to vector<8x128xf32>
    %82 = vector.broadcast %0 : vector<1x128xf32> to vector<8x128xf32>
    %83 = arith.mulf %81, %82 : vector<8x128xf32>
    %cst_25 = arith.constant dense<0.000000e+00> : vector<8xf32>
    %84 = vector.multi_reduction <add>, %83, %cst_25 [1] : vector<8x128xf32> to vector<8xf32>
    %85 = vector.shape_cast %84 : vector<8xf32> to vector<8x1xf32>
    %c7_i32 = arith.constant 7 : i32
    %86 = vector.broadcast %c7_i32 : i32 to vector<8x8xi32>
    %87 = arith.cmpi eq, %1, %86 : vector<8x8xi32>
    %88 = vector.shape_cast %85 : vector<8x1xf32> to vector<8x1xf32>
    %89 = vector.broadcast %88 : vector<8x1xf32> to vector<8x8xf32>
    %90 = arith.select %87, %89, %79 : vector<8x8xi1>, vector<8x8xf32>
    %cst_26 = arith.constant dense<0xFF800000> : vector<8xf32>
    %91 = vector.multi_reduction <maximumf>, %90, %cst_26 [1] : vector<8x8xf32> to vector<8xf32>
    %92 = vector.shape_cast %91 : vector<8xf32> to vector<8x1xf32>
    %93 = vector.broadcast %92 : vector<8x1xf32> to vector<8x8xf32>
    %94 = arith.subf %90, %93 : vector<8x8xf32>
    %95 = math.exp %94 : vector<8x8xf32>
    %cst_27 = arith.constant dense<0.000000e+00> : vector<8xf32>
    %96 = vector.multi_reduction <add>, %95, %cst_27 [1] : vector<8x8xf32> to vector<8xf32>
    %97 = vector.shape_cast %96 : vector<8xf32> to vector<8x1xf32>
    %98 = tpu.reciprocal %97 {approx = true} : vector<8x1xf32> -> vector<8x1xf32>
    %99 = vector.broadcast %98 : vector<8x1xf32> to vector<8x8xf32>
    %100 = arith.mulf %95, %99 : vector<8x8xf32>
    %c0_28 = arith.constant 0 : index
    %c0_29 = arith.constant 0 : index
    %101 = vector.load %arg6[%c0_28, %c0_29] : memref<8x8xf32, #tpu.memory_space<vmem>>, vector<8x8xf32>
    tpu.vector_store %arg6[%c0_28, %c0_29], %100 {strides = array<i32>} : memref<8x8xf32, #tpu.memory_space<vmem>>, vector<8x8xf32>,
    %cst_30 = arith.constant 0.000000e+00 : f32
    %102 = vector.broadcast %cst_30 : f32 to vector<8x128xf32>
    %c0_31 = arith.constant 0 : index
    %c0_32 = arith.constant 0 : index
    %c0_33 = arith.constant 0 : index
    %103 = vector.load %arg1[%c0_31, %c0_32, %c0_33] : memref<8x8x128xf32, #tpu.memory_space<vmem>>, vector<8x1x128xf32>
    %104 = vector.shape_cast %103 : vector<8x1x128xf32> to vector<8x128xf32>
    %c0_i32_34 = arith.constant 0 : i32
    %105 = vector.broadcast %c0_i32_34 : i32 to vector<8x8xi32>
    %106 = arith.cmpi eq, %1, %105 : vector<8x8xi32>
    %cst_35 = arith.constant 0.000000e+00 : f32
    %107 = vector.broadcast %cst_35 : f32 to vector<8x8xf32>
    %108 = arith.select %106, %100, %107 : vector<8x8xi1>, vector<8x8xf32>
    %cst_36 = arith.constant dense<0.000000e+00> : vector<8xf32>
    %109 = vector.multi_reduction <add>, %108, %cst_36 [1] : vector<8x8xf32> to vector<8xf32>
    %110 = vector.shape_cast %109 : vector<8xf32> to vector<8x1xf32>
    %111 = vector.broadcast %110 : vector<8x1xf32> to vector<8x128xf32>
    %112 = arith.mulf %111, %104 : vector<8x128xf32>
    %113 = arith.addf %102, %112 : vector<8x128xf32>
    %c0_37 = arith.constant 0 : index
    %c1_38 = arith.constant 1 : index
    %c0_39 = arith.constant 0 : index
    %114 = vector.load %arg1[%c0_37, %c1_38, %c0_39] : memref<8x8x128xf32, #tpu.memory_space<vmem>>, vector<8x1x128xf32>
    %115 = vector.shape_cast %114 : vector<8x1x128xf32> to vector<8x128xf32>
    %c1_i32_40 = arith.constant 1 : i32
    %116 = vector.broadcast %c1_i32_40 : i32 to vector<8x8xi32>
    %117 = arith.cmpi eq, %1, %116 : vector<8x8xi32>
    %cst_41 = arith.constant 0.000000e+00 : f32
    %118 = vector.broadcast %cst_41 : f32 to vector<8x8xf32>
    %119 = arith.select %117, %100, %118 : vector<8x8xi1>, vector<8x8xf32>
    %cst_42 = arith.constant dense<0.000000e+00> : vector<8xf32>
    %120 = vector.multi_reduction <add>, %119, %cst_42 [1] : vector<8x8xf32> to vector<8xf32>
    %121 = vector.shape_cast %120 : vector<8xf32> to vector<8x1xf32>
    %122 = vector.broadcast %121 : vector<8x1xf32> to vector<8x128xf32>
    %123 = arith.mulf %122, %115 : vector<8x128xf32>
    %124 = arith.addf %113, %123 : vector<8x128xf32>
    %c0_43 = arith.constant 0 : index
    %c2_44 = arith.constant 2 : index
    %c0_45 = arith.constant 0 : index
    %125 = vector.load %arg1[%c0_43, %c2_44, %c0_45] : memref<8x8x128xf32, #tpu.memory_space<vmem>>, vector<8x1x128xf32>
    %126 = vector.shape_cast %125 : vector<8x1x128xf32> to vector<8x128xf32>
    %c2_i32_46 = arith.constant 2 : i32
    %127 = vector.broadcast %c2_i32_46 : i32 to vector<8x8xi32>
    %128 = arith.cmpi eq, %1, %127 : vector<8x8xi32>
    %cst_47 = arith.constant 0.000000e+00 : f32
    %129 = vector.broadcast %cst_47 : f32 to vector<8x8xf32>
    %130 = arith.select %128, %100, %129 : vector<8x8xi1>, vector<8x8xf32>
    %cst_48 = arith.constant dense<0.000000e+00> : vector<8xf32>
    %131 = vector.multi_reduction <add>, %130, %cst_48 [1] : vector<8x8xf32> to vector<8xf32>
    %132 = vector.shape_cast %131 : vector<8xf32> to vector<8x1xf32>
    %133 = vector.broadcast %132 : vector<8x1xf32> to vector<8x128xf32>
    %134 = arith.mulf %133, %126 : vector<8x128xf32>
    %135 = arith.addf %124, %134 : vector<8x128xf32>
    %c0_49 = arith.constant 0 : index
    %c3_50 = arith.constant 3 : index
    %c0_51 = arith.constant 0 : index
    %136 = vector.load %arg1[%c0_49, %c3_50, %c0_51] : memref<8x8x128xf32, #tpu.memory_space<vmem>>, vector<8x1x128xf32>
    %137 = vector.shape_cast %136 : vector<8x1x128xf32> to vector<8x128xf32>
    %c3_i32_52 = arith.constant 3 : i32
    %138 = vector.broadcast %c3_i32_52 : i32 to vector<8x8xi32>
    %139 = arith.cmpi eq, %1, %138 : vector<8x8xi32>
    %cst_53 = arith.constant 0.000000e+00 : f32
    %140 = vector.broadcast %cst_53 : f32 to vector<8x8xf32>
    %141 = arith.select %139, %100, %140 : vector<8x8xi1>, vector<8x8xf32>
    %cst_54 = arith.constant dense<0.000000e+00> : vector<8xf32>
    %142 = vector.multi_reduction <add>, %141, %cst_54 [1] : vector<8x8xf32> to vector<8xf32>
    %143 = vector.shape_cast %142 : vector<8xf32> to vector<8x1xf32>
    %144 = vector.broadcast %143 : vector<8x1xf32> to vector<8x128xf32>
    %145 = arith.mulf %144, %137 : vector<8x128xf32>
    %146 = arith.addf %135, %145 : vector<8x128xf32>
    %c0_55 = arith.constant 0 : index
    %c4_56 = arith.constant 4 : index
    %c0_57 = arith.constant 0 : index
    %147 = vector.load %arg1[%c0_55, %c4_56, %c0_57] : memref<8x8x128xf32, #tpu.memory_space<vmem>>, vector<8x1x128xf32>
    %148 = vector.shape_cast %147 : vector<8x1x128xf32> to vector<8x128xf32>
    %c4_i32_58 = arith.constant 4 : i32
    %149 = vector.broadcast %c4_i32_58 : i32 to vector<8x8xi32>
    %150 = arith.cmpi eq, %1, %149 : vector<8x8xi32>
    %cst_59 = arith.constant 0.000000e+00 : f32
    %151 = vector.broadcast %cst_59 : f32 to vector<8x8xf32>
    %152 = arith.select %150, %100, %151 : vector<8x8xi1>, vector<8x8xf32>
    %cst_60 = arith.constant dense<0.000000e+00> : vector<8xf32>
    %153 = vector.multi_reduction <add>, %152, %cst_60 [1] : vector<8x8xf32> to vector<8xf32>
    %154 = vector.shape_cast %153 : vector<8xf32> to vector<8x1xf32>
    %155 = vector.broadcast %154 : vector<8x1xf32> to vector<8x128xf32>
    %156 = arith.mulf %155, %148 : vector<8x128xf32>
    %157 = arith.addf %146, %156 : vector<8x128xf32>
    %c0_61 = arith.constant 0 : index
    %c5_62 = arith.constant 5 : index
    %c0_63 = arith.constant 0 : index
    %158 = vector.load %arg1[%c0_61, %c5_62, %c0_63] : memref<8x8x128xf32, #tpu.memory_space<vmem>>, vector<8x1x128xf32>
    %159 = vector.shape_cast %158 : vector<8x1x128xf32> to vector<8x128xf32>
    %c5_i32_64 = arith.constant 5 : i32
    %160 = vector.broadcast %c5_i32_64 : i32 to vector<8x8xi32>
    %161 = arith.cmpi eq, %1, %160 : vector<8x8xi32>
    %cst_65 = arith.constant 0.000000e+00 : f32
    %162 = vector.broadcast %cst_65 : f32 to vector<8x8xf32>
    %163 = arith.select %161, %100, %162 : vector<8x8xi1>, vector<8x8xf32>
    %cst_66 = arith.constant dense<0.000000e+00> : vector<8xf32>
    %164 = vector.multi_reduction <add>, %163, %cst_66 [1] : vector<8x8xf32> to vector<8xf32>
    %165 = vector.shape_cast %164 : vector<8xf32> to vector<8x1xf32>
    %166 = vector.broadcast %165 : vector<8x1xf32> to vector<8x128xf32>
    %167 = arith.mulf %166, %159 : vector<8x128xf32>
    %168 = arith.addf %157, %167 : vector<8x128xf32>
    %c0_67 = arith.constant 0 : index
    %c6_68 = arith.constant 6 : index
    %c0_69 = arith.constant 0 : index
    %169 = vector.load %arg1[%c0_67, %c6_68, %c0_69] : memref<8x8x128xf32, #tpu.memory_space<vmem>>, vector<8x1x128xf32>
    %170 = vector.shape_cast %169 : vector<8x1x128xf32> to vector<8x128xf32>
    %c6_i32_70 = arith.constant 6 : i32
    %171 = vector.broadcast %c6_i32_70 : i32 to vector<8x8xi32>
    %172 = arith.cmpi eq, %1, %171 : vector<8x8xi32>
    %cst_71 = arith.constant 0.000000e+00 : f32
    %173 = vector.broadcast %cst_71 : f32 to vector<8x8xf32>
    %174 = arith.select %172, %100, %173 : vector<8x8xi1>, vector<8x8xf32>
    %cst_72 = arith.constant dense<0.000000e+00> : vector<8xf32>
    %175 = vector.multi_reduction <add>, %174, %cst_72 [1] : vector<8x8xf32> to vector<8xf32>
    %176 = vector.shape_cast %175 : vector<8xf32> to vector<8x1xf32>
    %177 = vector.broadcast %176 : vector<8x1xf32> to vector<8x128xf32>
    %178 = arith.mulf %177, %170 : vector<8x128xf32>
    %179 = arith.addf %168, %178 : vector<8x128xf32>
    %c0_73 = arith.constant 0 : index
    %c7_74 = arith.constant 7 : index
    %c0_75 = arith.constant 0 : index
    %180 = vector.load %arg1[%c0_73, %c7_74, %c0_75] : memref<8x8x128xf32, #tpu.memory_space<vmem>>, vector<8x1x128xf32>
    %181 = vector.shape_cast %180 : vector<8x1x128xf32> to vector<8x128xf32>
    %c7_i32_76 = arith.constant 7 : i32
    %182 = vector.broadcast %c7_i32_76 : i32 to vector<8x8xi32>
    %183 = arith.cmpi eq, %1, %182 : vector<8x8xi32>
    %cst_77 = arith.constant 0.000000e+00 : f32
    %184 = vector.broadcast %cst_77 : f32 to vector<8x8xf32>
    %185 = arith.select %183, %100, %184 : vector<8x8xi1>, vector<8x8xf32>
    %cst_78 = arith.constant dense<0.000000e+00> : vector<8xf32>
    %186 = vector.multi_reduction <add>, %185, %cst_78 [1] : vector<8x8xf32> to vector<8xf32>
    %187 = vector.shape_cast %186 : vector<8xf32> to vector<8x1xf32>
    %188 = vector.broadcast %187 : vector<8x1xf32> to vector<8x128xf32>
    %189 = arith.mulf %188, %181 : vector<8x128xf32>
    %190 = arith.addf %179, %189 : vector<8x128xf32>
    %c0_79 = arith.constant 0 : index
    %c0_80 = arith.constant 0 : index
    %191 = vector.load %arg3[%c0_79, %c0_80] : memref<128x128xf32, #tpu.memory_space<vmem>>, vector<128x128xf32>
    %cst_81 = arith.constant dense<0.000000e+00> : vector<8x128xf32>
    %192 = tpu.matmul %190, %191, %cst_81 {dimension_numbers = #tpu.dot_dimension_numbers<[1], [1], [0], [0], [0, 0, 1, 0], [], []>} : vector<8x128xf32>, vector<128x128xf32>, vector<8x128xf32> -> vector<8x128xf32>
    %c0_82 = arith.constant 0 : index
    %c0_83 = arith.constant 0 : index
    %193 = vector.load %arg4[%c0_82, %c0_83] : memref<1x128xf32, #tpu.memory_space<vmem>>, vector<1x128xf32>
    %194 = vector.broadcast %193 : vector<1x128xf32> to vector<8x128xf32>
    %195 = arith.addf %192, %194 : vector<8x128xf32>
    %c0_84 = arith.constant 0 : index
    %c0_85 = arith.constant 0 : index
    %196 = vector.load %arg5[%c0_84, %c0_85] : memref<8x128xf32, #tpu.memory_space<vmem>>, vector<8x128xf32>
    tpu.vector_store %arg5[%c0_84, %c0_85], %195 {strides = array<i32>} : memref<8x128xf32, #tpu.memory_space<vmem>>, vector<8x128xf32>,
    return
  }
  func.func @transform_0(%arg0: i32) -> (i32, i32, i32) {
    %c0_i32 = arith.constant 0 : i32
    %c0_i32_0 = arith.constant 0 : i32
    %c0_i32_1 = arith.constant 0 : i32
    return %arg0, %c0_i32, %c0_i32_0 : i32, i32, i32
  }
  func.func @transform_1(%arg0: i32) -> (i32, i32) {
    %c0_i32 = arith.constant 0 : i32
    %c0_i32_0 = arith.constant 0 : i32
    %c0_i32_1 = arith.constant 0 : i32
    return %c0_i32, %c0_i32_0 : i32, i32
  }
  func.func @transform_2(%arg0: i32) -> (i32, i32) {
    %c0_i32 = arith.constant 0 : i32
    %c0_i32_0 = arith.constant 0 : i32
    %c0_i32_1 = arith.constant 0 : i32
    return %c0_i32, %c0_i32_0 : i32, i32
  }
  func.func @transform_3(%arg0: i32) -> (i32, i32) {
    %c0_i32 = arith.constant 0 : i32
    %c0_i32_0 = arith.constant 0 : i32
    %c0_i32_1 = arith.constant 0 : i32
    return %c0_i32, %c0_i32_0 : i32, i32
  }
  func.func @transform_4(%arg0: i32) -> (i32, i32) {
    %c0_i32 = arith.constant 0 : i32
    %c0_i32_0 = arith.constant 0 : i32
    return %arg0, %c0_i32 : i32, i32
  }
  func.func @transform_5(%arg0: i32) -> (i32, i32) {
    %c0_i32 = arith.constant 0 : i32
    %c0_i32_0 = arith.constant 0 : i32
    return %arg0, %c0_i32 : i32, i32
  }
}

</mosaic_0001>

<llo_original>
// kernel: tpu_custom_call.1
$region0: #{tpu_custom_call.1}
  #allocation0 [shape = 'u32[]', space=smem, size = 0x4, offset = 0x4, fixed_abs, tag = 'smem constant byte address 0x4 - core index']
  #allocation1 [shape = 'u32[144,128]{1,0:T(1,128)}', space=vmem, size = 0x12000, scoped, tag = 'internal scratch']
  %s0 = inlined_call_operand.hbm [shape: f32[16,8,128], index: 0, kind: input, shape index: {}]
  %s1 = inlined_call_operand.vmem [shape: f32[1,128], index: 1, kind: input, shape index: {}]
  %s2 = inlined_call_operand.hbm [shape: f32[128,128], index: 2, kind: input, shape index: {}]
  %s3 = inlined_call_operand.vmem [shape: f32[1,128], index: 3, kind: input, shape index: {}]
  %s4 = inlined_call_operand.hbm [shape: f32[16,128], index: 4, kind: output, shape index: {0}]
  %s5 = inlined_call_operand.vmem [shape: f32[16,8], index: 5, kind: output, shape index: {1}]
  %6 = xla_tuple %s4, %s5
  %s7 = sld [smem:[#allocation0]]
  $region65: #{tpu_custom_call.1} parent=0
    _
  %s9 = ssub.s32 1, %s7
  %s10 = scalar_select 0, %s9, %s7
  $region1: #{tpu_custom_call.1} parent=0
    #allocation2 [shape = 'u8[65536]{0}', space=vmem, size = 0x10000, scoped, tag = 'input window, operand 0']
    #allocation3 [shape = 's32[2]{0}', space=sflag, size = 0x8, scoped, tag = 'scoped memory for tpu_custom_call.1']
    #allocation4 [shape = 's32[2]{0}', space=sflag, size = 0x8, scoped, tag = 'scoped memory for tpu_custom_call.1']
    #allocation5 [shape = 'u8[65536]{0}', space=vmem, size = 0x10000, scoped, tag = 'input window, operand 2, single buffered']
    #allocation6 [shape = 's32[1]{0}', space=sflag, size = 0x4, scoped, tag = 'scoped memory for tpu_custom_call.1']
    #allocation7 [shape = 'u8[8192]{0}', space=vmem, size = 0x2000, scoped, tag = 'output window, operand 0']
    %11 = vsyncpa [#allocation3], 0
    %s12 = scalar_lea.sflag [#allocation3], 1
    %13 = vsyncpa %s12, 0
    %14 = vsyncpa [#allocation6], 0
    %15 = vsyncpa [#allocation4], 0
    %s16 = scalar_lea.sflag [#allocation4], 1
    %17 = vsyncpa %s16, 0
    loop: start=0, step=1, limit=4
    $region2: #{tpu_custom_call.1} parent=1 // loop_pre_header
      _
    $region3: #{tpu_custom_call.1} parent=1 // loop_header
      %s19 = sphi 0, %s23
      %p20 = scmp.ge.s32.totalorder %s19, 4
      %s29 = sphi 0, %s31
      %s32 = sphi 0, %s29
      %s33 = sphi 0, %s32
      %s49 = sphi 0, %s33
      %s53 = sphi 0, %s53
      %s55 = sphi 0, %s53
      %s56 = sphi 0, %s55
      %s70 = sphi 0, %s56
      %s74 = sphi 0, %s74
      %s76 = sphi 0, %s74
      %s77 = sphi 0, %s76
      %s91 = sphi 0, %s77
      %s95 = sphi 0, %s95
      %s97 = sphi 0, %s95
      %s98 = sphi 0, %s97
      %s112 = sphi 0, %s98
      %s118 = sphi 0, %s120
      %s121 = sphi 0, %s118
      %s122 = sphi 0, %s121
      %s138 = sphi 0, %s122
      %s144 = sphi 0, %s146
      %s147 = sphi 0, %s144
      %s148 = sphi 0, %s147
      %s164 = sphi 0, %s148
    $region4: #{tpu_custom_call.1} parent=1 // loop_header_branch
      %22 = sbr.rel (%p20) target = $region8
    $region5: #{tpu_custom_call.1} parent=1 // loop_body
      %s24 = ssub.s32 %s19, 1
      %s25 = ssub.s32 %s19, 2
      %s26 = sadd.s32 %s19, 1
      %s27 = ssub.s32 %s19, %s26
      %p28 = scmp.eq.s32.totalorder %s27, 0
      %s30 = sadd.s32 %s29, 1
      %s31 = scalar_select %p28, %s29, %s30
      %p34 = pneg %p28
      %p35 = scmp.eq.s32.totalorder %s19, 1
      %p36 = por %p34, %p35
      %p37 = scmp.ne.s32.totalorder %s29, %s32
      %p38 = scmp.eq.s32.totalorder %s19, 0
      %p39 = por %p37, %p38
      %p40 = scmp.ne.s32.totalorder %s29, %s32
      %p41 = scmp.eq.s32.totalorder %s24, 1
      %p42 = por %p40, %p41
      %p43 = scmp.ne.s32.totalorder %s32, %s33
      %p44 = scmp.eq.s32.totalorder %s24, 0
      %p45 = por %p43, %p44
      %p46 = scmp.ne.s32.totalorder %s32, %s33
      %p47 = scmp.eq.s32.totalorder %s25, 1
      %p48 = por %p46, %p47
      %p50 = scmp.ne.s32.totalorder %s33, %s49
      %p51 = scmp.eq.s32.totalorder %s25, 0
      %p52 = por %p50, %p51
      %s54 = sadd.s32 %s53, 1
      %p57 = scmp.eq.s32.totalorder %s19, 1
      %p58 = scmp.ne.s32.totalorder %s53, %s55
      %p59 = scmp.eq.s32.totalorder %s19, 0
      %p60 = por %p58, %p59
      %p61 = scmp.ne.s32.totalorder %s53, %s55
      %p62 = scmp.eq.s32.totalorder %s24, 1
      %p63 = por %p61, %p62
      %p64 = scmp.ne.s32.totalorder %s55, %s56
      %p65 = scmp.eq.s32.totalorder %s24, 0
      %p66 = por %p64, %p65
      %p67 = scmp.ne.s32.totalorder %s55, %s56
      %p68 = scmp.eq.s32.totalorder %s25, 1
      %p69 = por %p67, %p68
      %p71 = scmp.ne.s32.totalorder %s56, %s70
      %p72 = scmp.eq.s32.totalorder %s25, 0
      %p73 = por %p71, %p72
      %s75 = sadd.s32 %s74, 1
      %p78 = scmp.eq.s32.totalorder %s19, 1
      %p79 = scmp.ne.s32.totalorder %s74, %s76
      %p80 = scmp.eq.s32.totalorder %s19, 0
      %p81 = por %p79, %p80
      %p82 = scmp.ne.s32.totalorder %s74, %s76
      %p83 = scmp.eq.s32.totalorder %s24, 1
      %p84 = por %p82, %p83
      %p85 = scmp.ne.s32.totalorder %s76, %s77
      %p86 = scmp.eq.s32.totalorder %s24, 0
      %p87 = por %p85, %p86
      %p88 = scmp.ne.s32.totalorder %s76, %s77
      %p89 = scmp.eq.s32.totalorder %s25, 1
      %p90 = por %p88, %p89
      %p92 = scmp.ne.s32.totalorder %s77, %s91
      %p93 = scmp.eq.s32.totalorder %s25, 0
      %p94 = por %p92, %p93
      %s96 = sadd.s32 %s95, 1
      %p99 = scmp.eq.s32.totalorder %s19, 1
      %p100 = scmp.ne.s32.totalorder %s95, %s97
      %p101 = scmp.eq.s32.totalorder %s19, 0
      %p102 = por %p100, %p101
      %p103 = scmp.ne.s32.totalorder %s95, %s97
      %p104 = scmp.eq.s32.totalorder %s24, 1
      %p105 = por %p103, %p104
      %p106 = scmp.ne.s32.totalorder %s97, %s98
      %p107 = scmp.eq.s32.totalorder %s24, 0
      %p108 = por %p106, %p107
      %p109 = scmp.ne.s32.totalorder %s97, %s98
      %p110 = scmp.eq.s32.totalorder %s25, 1
      %p111 = por %p109, %p110
      %p113 = scmp.ne.s32.totalorder %s98, %s112
      %p114 = scmp.eq.s32.totalorder %s25, 0
      %p115 = por %p113, %p114
      %s116 = ssub.s32 %s19, %s26
      %p117 = scmp.eq.s32.totalorder %s116, 0
      %s119 = sadd.s32 %s118, 1
      %s120 = scalar_select %p117, %s118, %s119
      %p123 = pneg %p117
      %p124 = scmp.eq.s32.totalorder %s19, 1
      %p125 = por %p123, %p124
      %p126 = scmp.ne.s32.totalorder %s118, %s121
      %p127 = scmp.eq.s32.totalorder %s19, 0
      %p128 = por %p126, %p127
      %p129 = scmp.ne.s32.totalorder %s118, %s121
      %p130 = scmp.eq.s32.totalorder %s24, 1
      %p131 = por %p129, %p130
      %p132 = scmp.ne.s32.totalorder %s121, %s122
      %p133 = scmp.eq.s32.totalorder %s24, 0
      %p134 = por %p132, %p133
      %p135 = scmp.ne.s32.totalorder %s121, %s122
      %p136 = scmp.eq.s32.totalorder %s25, 1
      %p137 = por %p135, %p136
      %p139 = scmp.ne.s32.totalorder %s122, %s138
      %p140 = scmp.eq.s32.totalorder %s25, 0
      %p141 = por %p139, %p140
      %s142 = ssub.s32 %s19, %s26
      %p143 = scmp.eq.s32.totalorder %s142, 0
      %s145 = sadd.s32 %s144, 1
      %s146 = scalar_select %p143, %s144, %s145
      %p149 = pneg %p143
      %p150 = scmp.eq.s32.totalorder %s19, 1
      %p151 = por %p149, %p150
      %p152 = scmp.ne.s32.totalorder %s144, %s147
      %p153 = scmp.eq.s32.totalorder %s19, 0
      %p154 = por %p152, %p153
      %p155 = scmp.ne.s32.totalorder %s144, %s147
      %p156 = scmp.eq.s32.totalorder %s24, 1
      %p157 = por %p155, %p156
      %p158 = scmp.ne.s32.totalorder %s147, %s148
      %p159 = scmp.eq.s32.totalorder %s24, 0
      %p160 = por %p158, %p159
      %p161 = scmp.ne.s32.totalorder %s147, %s148
      %p162 = scmp.eq.s32.totalorder %s25, 1
      %p163 = por %p161, %p162
      %p165 = scmp.ne.s32.totalorder %s148, %s164
      %p166 = scmp.eq.s32.totalorder %s25, 0
      %p167 = por %p165, %p166
      %p168 = scmp.le.s32.totalorder 1, %s19
      %p169 = scmp.lt.s32.totalorder %s19, 3
      %p170 = pnand %p168, %p169
      %p171 = pneg %p170
      // Predicated region
      $region9: #{tpu_custom_call.1} parent=5 // pred_check
        _
      $region10: #{tpu_custom_call.1} parent=5 // pred_check_branch
        %173 = sbr.rel (%p170) target = $region12
      $region11: #{tpu_custom_call.1} parent=5 // pred_region
        %s174 = ssub.s32 %s19, 1
        // Predicated region
        $region13: #{tpu_custom_call.1} parent=11 // pred_check
          %p175 = pneg %p66
        $region14: #{tpu_custom_call.1} parent=11 // pred_check_branch
          %177 = sbr.rel (%p175) target = $region16
        $region15: #{tpu_custom_call.1} parent=11 // pred_region
          _
        $region16: #{tpu_custom_call.1} parent=11 // pred_fallthru
          _
        // Predicated region
        $region17: #{tpu_custom_call.1} parent=11 // pred_check
          %p178 = pneg %p87
        $region18: #{tpu_custom_call.1} parent=11 // pred_check_branch
          %180 = sbr.rel (%p178) target = $region20
        $region19: #{tpu_custom_call.1} parent=11 // pred_region
          %s182 = ssub.s32 2048, 2048
          %183 = vsyncadd [#allocation6], %s182
          %s184 = sshll.u32 [#allocation5], 4
          %s185 = int_to_ptr.vmem [resolvable:$true] %s184
          %190 = dma.hbm_to_vmem [thread:$0]  %s2, 2048, %s185, [#allocation6], 128, 128, 8
        $region20: #{tpu_custom_call.1} parent=11 // pred_fallthru
          _
        // Predicated region
        $region21: #{tpu_custom_call.1} parent=11 // pred_check
          %p191 = pneg %p108
        $region22: #{tpu_custom_call.1} parent=11 // pred_check_branch
          %193 = sbr.rel (%p191) target = $region24
        $region23: #{tpu_custom_call.1} parent=11 // pred_region
          _
        $region24: #{tpu_custom_call.1} parent=11 // pred_fallthru
          _
      $region12: #{tpu_custom_call.1} parent=5 // pred_fallthru
        _
      %p194 = scmp.lt.s32.totalorder %s19, 2
      // Predicated region
      $region25: #{tpu_custom_call.1} parent=5 // pred_check
        %p195 = pneg %p194
      $region26: #{tpu_custom_call.1} parent=5 // pred_check_branch
        %197 = sbr.rel (%p195) target = $region28
      $region27: #{tpu_custom_call.1} parent=5 // pred_region
        // Predicated region
        $region29: #{tpu_custom_call.1} parent=27 // pred_check
          %p198 = pneg %p39
        $region30: #{tpu_custom_call.1} parent=27 // pred_check_branch
          %200 = sbr.rel (%p198) target = $region32
        $region31: #{tpu_custom_call.1} parent=27 // pred_region
          %s201 = sand.u32 %s29, 1
          %s202 = scalar_lea.sflag [#allocation3], %s201
          %s203 = sand.u32 %s29, 1
          %s204 = smul.addr %s203, 64
          %s205 = scalar_lea.vmem [#allocation2], %s204
          %s206 = smul.u32 8, %s19
          %s208 = ssub.s32 1024, 1024
          %209 = vsyncadd %s202, %s208
          %s210 = smul.addr %s206, 128
          %s211 = scalar_lea.hbm %s0, %s210
          %s212 = sshll.u32 %s205, 4
          %s213 = int_to_ptr.vmem [resolvable:$true] %s212
          %218 = dma.hbm_to_vmem [thread:$0]  %s211, 1024, %s213, %s202, 128, 128, 8
        $region32: #{tpu_custom_call.1} parent=27 // pred_fallthru
          _
      $region28: #{tpu_custom_call.1} parent=5 // pred_fallthru
        _
      %p219 = scmp.le.s32.totalorder 1, %s19
      %p220 = scmp.lt.s32.totalorder %s19, 3
      %p221 = pnand %p219, %p220
      %p222 = pneg %p221
      // Predicated region
      $region33: #{tpu_custom_call.1} parent=5 // pred_check
        _
      $region34: #{tpu_custom_call.1} parent=5 // pred_check_branch
        %224 = sbr.rel (%p221) target = $region36
      $region35: #{tpu_custom_call.1} parent=5 // pred_region
        %s225 = ssub.s32 %s19, 1
        %s226 = sand.u32 %s32, 1
        %s227 = scalar_lea.sflag [#allocation3], %s226
        %s228 = sand.u32 %s32, 1
        %s229 = smul.addr %s228, 64
        %s230 = scalar_lea.vmem [#allocation2], %s229
        // Predicated region
        $region37: #{tpu_custom_call.1} parent=35 // pred_check
          %p231 = pneg %p45
        $region38: #{tpu_custom_call.1} parent=35 // pred_check_branch
          %233 = sbr.rel (%p231) target = $region40
        $region39: #{tpu_custom_call.1} parent=35 // pred_region
          %234 = dma.done %s227, 1024
        $region40: #{tpu_custom_call.1} parent=35 // pred_fallthru
          _
        // Predicated region
        $region41: #{tpu_custom_call.1} parent=35 // pred_check
          %p235 = pneg %p87
        $region42: #{tpu_custom_call.1} parent=35 // pred_check_branch
          %237 = sbr.rel (%p235) target = $region44
        $region43: #{tpu_custom_call.1} parent=35 // pred_region
          %238 = dma.done [#allocation6], 2048
        $region44: #{tpu_custom_call.1} parent=35 // pred_fallthru
          _
        %s239 = sand.u32 %s32, 1
        %s240 = scalar_lea.sflag [#allocation3], %s239
        %s241 = sand.u32 %s32, 1
        %s242 = smul.addr %s241, 64
        %s243 = scalar_lea.vmem [#allocation2], %s242
        %p244 = pneg %p45
        %p245 = pneg %p42
        %p246 = pneg %p66
        %p247 = pneg %p63
        %p248 = pneg %p87
        %p249 = pneg %p84
        %p250 = pneg %p108
        %p251 = pneg %p105
        %p252 = pneg %p134
        %p253 = pneg %p131
        %s254 = sand.u32 %s121, 1
        %s255 = scalar_lea.sflag [#allocation4], %s254
        %s256 = sand.u32 %s121, 1
        %s257 = smul.addr %s256, 8
        %s258 = scalar_lea.vmem [#allocation7], %s257
        %p259 = pneg %p160
        %p260 = pneg %p157
        %p261 = scmp.lt.s32.totalorder %s24, 1
        %s262 = scalar_select %p261, %s24, 1
        %s263 = smul.addr %s262, 8
        %s264 = scalar_lea.vmem %s5, %s263
        %s265 = smul.u32 8, %s24
        %p266 = scmp.lt.s32.totalorder %s24, 1
        %s267 = scalar_select %p266, %s24, 1
        %s268 = smul.addr %s267, 8
        %s269 = scalar_lea.vmem %s5, %s268
        %v270 = vld [vmem:[%s1] sm:$0x1]
        %v271 = vlaneseq
        %v272 = vand.u32 %v271, 127
        %v273 = vld [vmem:[%s230] sm:$0x1]
        %v274 = vld [vmem:[%s230 + $0x8] sm:$0x1]
        %v275 = vld [vmem:[%s230 + $0x10] sm:$0x1]
        %v276 = vld [vmem:[%s230 + $0x18] sm:$0x1]
        %v277 = vld [vmem:[%s230 + $0x20] sm:$0x1]
        %v278 = vld [vmem:[%s230 + $0x28] sm:$0x1]
        %v279 = vld [vmem:[%s230 + $0x30] sm:$0x1]
        %v280 = vld [vmem:[%s230 + $0x38] sm:$0x1]
        %v282 = vlaneseq
        %v283 = vshrl.u32 %v282, 7
        %v284 = vsub.s32 0, %v283
        %v285 = vrot.slane %v270, %v284
        %v287 = vmul.f32 %v273, %v285
        %v288 = vmul.f32 %v274, %v285
        %v289 = vmul.f32 %v275, %v285
        %v290 = vmul.f32 %v276, %v285
        %v291 = vmul.f32 %v277, %v285
        %v292 = vmul.f32 %v278, %v285
        %v293 = vmul.f32 %v279, %v285
        %v294 = vmul.f32 %v280, %v285
        %v303 = vrot.slane %v288, 7
        %vm304 = vcmask 1041409
        %v305 = vsel %vm304, %v303, %v287
        %v306 = vrot.slane %v289, 6
        %vm307 = vcmask 1042434
        %v308 = vsel %vm307, %v306, %v305
        %v309 = vrot.slane %v290, 5
        %vm310 = vcmask 1043459
        %v311 = vsel %vm310, %v309, %v308
        %v312 = vrot.slane %v291, 4
        %vm313 = vcmask 1044484
        %v314 = vsel %vm313, %v312, %v311
        %v315 = vrot.slane %v292, 3
        %vm316 = vcmask 1045509
        %v317 = vsel %vm316, %v315, %v314
        %v318 = vrot.slane %v293, 2
        %vm319 = vcmask 1046534
        %v320 = vsel %vm319, %v318, %v317
        %v321 = vrot.slane %v294, 1
        %vm322 = vcmask 1047559
        %v323 = vsel %vm322, %v321, %v320
        %325 = vadd.xlane.f32.xlu0 %v323
        %v326 = vpop.xlane.xlu0 %325
        %vm327 = vcmp.eq.s32.totalorder %v272, 0
        %v328 = vsel %vm327, %v326, 0.0
        %v329 = vld [vmem:[%s230 + $0x1] sm:$0x1]
        %v330 = vld [vmem:[%s230 + $0x9] sm:$0x1]
        %v331 = vld [vmem:[%s230 + $0x11] sm:$0x1]
        %v332 = vld [vmem:[%s230 + $0x19] sm:$0x1]
        %v333 = vld [vmem:[%s230 + $0x21] sm:$0x1]
        %v334 = vld [vmem:[%s230 + $0x29] sm:$0x1]
        %v335 = vld [vmem:[%s230 + $0x31] sm:$0x1]
        %v336 = vld [vmem:[%s230 + $0x39] sm:$0x1]
        %v337 = vmul.f32 %v329, %v285
        %v338 = vmul.f32 %v330, %v285
        %v339 = vmul.f32 %v331, %v285
        %v340 = vmul.f32 %v332, %v285
        %v341 = vmul.f32 %v333, %v285
        %v342 = vmul.f32 %v334, %v285
        %v343 = vmul.f32 %v335, %v285
        %v344 = vmul.f32 %v336, %v285
        %v353 = vrot.slane %v338, 7
        %v354 = vsel %vm304, %v353, %v337
        %v355 = vrot.slane %v339, 6
        %v356 = vsel %vm307, %v355, %v354
        %v357 = vrot.slane %v340, 5
        %v358 = vsel %vm310, %v357, %v356
        %v359 = vrot.slane %v341, 4
        %v360 = vsel %vm313, %v359, %v358
        %v361 = vrot.slane %v342, 3
        %v362 = vsel %vm316, %v361, %v360
        %v363 = vrot.slane %v343, 2
        %v364 = vsel %vm319, %v363, %v362
        %v365 = vrot.slane %v344, 1
        %v366 = vsel %vm322, %v365, %v364
        %368 = vadd.xlane.f32.xlu0 %v366
        %v369 = vpop.xlane.xlu0 %368
        %vm370 = vcmp.eq.s32.totalorder %v272, 1
        %v371 = vsel %vm370, %v369, %v328
        %v372 = vld [vmem:[%s230 + $0x2] sm:$0x1]
        %v373 = vld [vmem:[%s230 + $0xa] sm:$0x1]
        %v374 = vld [vmem:[%s230 + $0x12] sm:$0x1]
        %v375 = vld [vmem:[%s230 + $0x1a] sm:$0x1]
        %v376 = vld [vmem:[%s230 + $0x22] sm:$0x1]
        %v377 = vld [vmem:[%s230 + $0x2a] sm:$0x1]
        %v378 = vld [vmem:[%s230 + $0x32] sm:$0x1]
        %v379 = vld [vmem:[%s230 + $0x3a] sm:$0x1]
        %v380 = vmul.f32 %v372, %v285
        %v381 = vmul.f32 %v373, %v285
        %v382 = vmul.f32 %v374, %v285
        %v383 = vmul.f32 %v375, %v285
        %v384 = vmul.f32 %v376, %v285
        %v385 = vmul.f32 %v377, %v285
        %v386 = vmul.f32 %v378, %v285
        %v387 = vmul.f32 %v379, %v285
        %v396 = vrot.slane %v381, 7
        %v397 = vsel %vm304, %v396, %v380
        %v398 = vrot.slane %v382, 6
        %v399 = vsel %vm307, %v398, %v397
        %v400 = vrot.slane %v383, 5
        %v401 = vsel %vm310, %v400, %v399
        %v402 = vrot.slane %v384, 4
        %v403 = vsel %vm313, %v402, %v401
        %v404 = vrot.slane %v385, 3
        %v405 = vsel %vm316, %v404, %v403
        %v406 = vrot.slane %v386, 2
        %v407 = vsel %vm319, %v406, %v405
        %v408 = vrot.slane %v387, 1
        %v409 = vsel %vm322, %v408, %v407
        %411 = vadd.xlane.f32.xlu0 %v409
        %v412 = vpop.xlane.xlu0 %411
        %vm413 = vcmp.eq.s32.totalorder %v272, 2
        %v414 = vsel %vm413, %v412, %v371
        %v415 = vld [vmem:[%s230 + $0x3] sm:$0x1]
        %v416 = vld [vmem:[%s230 + $0xb] sm:$0x1]
        %v417 = vld [vmem:[%s230 + $0x13] sm:$0x1]
        %v418 = vld [vmem:[%s230 + $0x1b] sm:$0x1]
        %v419 = vld [vmem:[%s230 + $0x23] sm:$0x1]
        %v420 = vld [vmem:[%s230 + $0x2b] sm:$0x1]
        %v421 = vld [vmem:[%s230 + $0x33] sm:$0x1]
        %v422 = vld [vmem:[%s230 + $0x3b] sm:$0x1]
        %v423 = vmul.f32 %v415, %v285
        %v424 = vmul.f32 %v416, %v285
        %v425 = vmul.f32 %v417, %v285
        %v426 = vmul.f32 %v418, %v285
        %v427 = vmul.f32 %v419, %v285
        %v428 = vmul.f32 %v420, %v285
        %v429 = vmul.f32 %v421, %v285
        %v430 = vmul.f32 %v422, %v285
        %v439 = vrot.slane %v424, 7
        %v440 = vsel %vm304, %v439, %v423
        %v441 = vrot.slane %v425, 6
        %v442 = vsel %vm307, %v441, %v440
        %v443 = vrot.slane %v426, 5
        %v444 = vsel %vm310, %v443, %v442
        %v445 = vrot.slane %v427, 4
        %v446 = vsel %vm313, %v445, %v444
        %v447 = vrot.slane %v428, 3
        %v448 = vsel %vm316, %v447, %v446
        %v449 = vrot.slane %v429, 2
        %v450 = vsel %vm319, %v449, %v448
        %v451 = vrot.slane %v430, 1
        %v452 = vsel %vm322, %v451, %v450
        %454 = vadd.xlane.f32.xlu0 %v452
        %v455 = vpop.xlane.xlu0 %454
        %vm456 = vcmp.eq.s32.totalorder %v272, 3
        %v457 = vsel %vm456, %v455, %v414
        %v458 = vld [vmem:[%s230 + $0x4] sm:$0x1]
        %v459 = vld [vmem:[%s230 + $0xc] sm:$0x1]
        %v460 = vld [vmem:[%s230 + $0x14] sm:$0x1]
        %v461 = vld [vmem:[%s230 + $0x1c] sm:$0x1]
        %v462 = vld [vmem:[%s230 + $0x24] sm:$0x1]
        %v463 = vld [vmem:[%s230 + $0x2c] sm:$0x1]
        %v464 = vld [vmem:[%s230 + $0x34] sm:$0x1]
        %v465 = vld [vmem:[%s230 + $0x3c] sm:$0x1]
        %v466 = vmul.f32 %v458, %v285
        %v467 = vmul.f32 %v459, %v285
        %v468 = vmul.f32 %v460, %v285
        %v469 = vmul.f32 %v461, %v285
        %v470 = vmul.f32 %v462, %v285
        %v471 = vmul.f32 %v463, %v285
        %v472 = vmul.f32 %v464, %v285
        %v473 = vmul.f32 %v465, %v285
        %v482 = vrot.slane %v467, 7
        %v483 = vsel %vm304, %v482, %v466
        %v484 = vrot.slane %v468, 6
        %v485 = vsel %vm307, %v484, %v483
        %v486 = vrot.slane %v469, 5
        %v487 = vsel %vm310, %v486, %v485
        %v488 = vrot.slane %v470, 4
        %v489 = vsel %vm313, %v488, %v487
        %v490 = vrot.slane %v471, 3
        %v491 = vsel %vm316, %v490, %v489
        %v492 = vrot.slane %v472, 2
        %v493 = vsel %vm319, %v492, %v491
        %v494 = vrot.slane %v473, 1
        %v495 = vsel %vm322, %v494, %v493
        %497 = vadd.xlane.f32.xlu0 %v495
        %v498 = vpop.xlane.xlu0 %497
        %vm499 = vcmp.eq.s32.totalorder %v272, 4
        %v500 = vsel %vm499, %v498, %v457
        %v501 = vld [vmem:[%s230 + $0x5] sm:$0x1]
        %v502 = vld [vmem:[%s230 + $0xd] sm:$0x1]
        %v503 = vld [vmem:[%s230 + $0x15] sm:$0x1]
        %v504 = vld [vmem:[%s230 + $0x1d] sm:$0x1]
        %v505 = vld [vmem:[%s230 + $0x25] sm:$0x1]
        %v506 = vld [vmem:[%s230 + $0x2d] sm:$0x1]
        %v507 = vld [vmem:[%s230 + $0x35] sm:$0x1]
        %v508 = vld [vmem:[%s230 + $0x3d] sm:$0x1]
        %v509 = vmul.f32 %v501, %v285
        %v510 = vmul.f32 %v502, %v285
        %v511 = vmul.f32 %v503, %v285
        %v512 = vmul.f32 %v504, %v285
        %v513 = vmul.f32 %v505, %v285
        %v514 = vmul.f32 %v506, %v285
        %v515 = vmul.f32 %v507, %v285
        %v516 = vmul.f32 %v508, %v285
        %v525 = vrot.slane %v510, 7
        %v526 = vsel %vm304, %v525, %v509
        %v527 = vrot.slane %v511, 6
        %v528 = vsel %vm307, %v527, %v526
        %v529 = vrot.slane %v512, 5
        %v530 = vsel %vm310, %v529, %v528
        %v531 = vrot.slane %v513, 4
        %v532 = vsel %vm313, %v531, %v530
        %v533 = vrot.slane %v514, 3
        %v534 = vsel %vm316, %v533, %v532
        %v535 = vrot.slane %v515, 2
        %v536 = vsel %vm319, %v535, %v534
        %v537 = vrot.slane %v516, 1
        %v538 = vsel %vm322, %v537, %v536
        %540 = vadd.xlane.f32.xlu0 %v538
        %v541 = vpop.xlane.xlu0 %540
        %vm542 = vcmp.eq.s32.totalorder %v272, 5
        %v543 = vsel %vm542, %v541, %v500
        %v544 = vld [vmem:[%s230 + $0x6] sm:$0x1]
        %v545 = vld [vmem:[%s230 + $0xe] sm:$0x1]
        %v546 = vld [vmem:[%s230 + $0x16] sm:$0x1]
        %v547 = vld [vmem:[%s230 + $0x1e] sm:$0x1]
        %v548 = vld [vmem:[%s230 + $0x26] sm:$0x1]
        %v549 = vld [vmem:[%s230 + $0x2e] sm:$0x1]
        %v550 = vld [vmem:[%s230 + $0x36] sm:$0x1]
        %v551 = vld [vmem:[%s230 + $0x3e] sm:$0x1]
        %v552 = vmul.f32 %v544, %v285
        %v553 = vmul.f32 %v545, %v285
        %v554 = vmul.f32 %v546, %v285
        %v555 = vmul.f32 %v547, %v285
        %v556 = vmul.f32 %v548, %v285
        %v557 = vmul.f32 %v549, %v285
        %v558 = vmul.f32 %v550, %v285
        %v559 = vmul.f32 %v551, %v285
        %v568 = vrot.slane %v553, 7
        %v569 = vsel %vm304, %v568, %v552
        %v570 = vrot.slane %v554, 6
        %v571 = vsel %vm307, %v570, %v569
        %v572 = vrot.slane %v555, 5
        %v573 = vsel %vm310, %v572, %v571
        %v574 = vrot.slane %v556, 4
        %v575 = vsel %vm313, %v574, %v573
        %v576 = vrot.slane %v557, 3
        %v577 = vsel %vm316, %v576, %v575
        %v578 = vrot.slane %v558, 2
        %v579 = vsel %vm319, %v578, %v577
        %v580 = vrot.slane %v559, 1
        %v581 = vsel %vm322, %v580, %v579
        %583 = vadd.xlane.f32.xlu0 %v581
        %v584 = vpop.xlane.xlu0 %583
        %vm585 = vcmp.eq.s32.totalorder %v272, 6
        %v586 = vsel %vm585, %v584, %v543
        %v587 = vld [vmem:[%s230 + $0x7] sm:$0x1]
        %v588 = vld [vmem:[%s230 + $0xf] sm:$0x1]
        %v589 = vld [vmem:[%s230 + $0x17] sm:$0x1]
        %v590 = vld [vmem:[%s230 + $0x1f] sm:$0x1]
        %v591 = vld [vmem:[%s230 + $0x27] sm:$0x1]
        %v592 = vld [vmem:[%s230 + $0x2f] sm:$0x1]
        %v593 = vld [vmem:[%s230 + $0x37] sm:$0x1]
        %v594 = vld [vmem:[%s230 + $0x3f] sm:$0x1]
        %v595 = vmul.f32 %v587, %v285
        %v596 = vmul.f32 %v588, %v285
        %v597 = vmul.f32 %v589, %v285
        %v598 = vmul.f32 %v590, %v285
        %v599 = vmul.f32 %v591, %v285
        %v600 = vmul.f32 %v592, %v285
        %v601 = vmul.f32 %v593, %v285
        %v602 = vmul.f32 %v594, %v285
        %v611 = vrot.slane %v596, 7
        %v612 = vsel %vm304, %v611, %v595
        %v613 = vrot.slane %v597, 6
        %v614 = vsel %vm307, %v613, %v612
        %v615 = vrot.slane %v598, 5
        %v616 = vsel %vm310, %v615, %v614
        %v617 = vrot.slane %v599, 4
        %v618 = vsel %vm313, %v617, %v616
        %v619 = vrot.slane %v600, 3
        %v620 = vsel %vm316, %v619, %v618
        %v621 = vrot.slane %v601, 2
        %v622 = vsel %vm319, %v621, %v620
        %v623 = vrot.slane %v602, 1
        %v624 = vsel %vm322, %v623, %v622
        %626 = vadd.xlane.f32.xlu0 %v624
        %v627 = vpop.xlane.xlu0 %626
        %vm628 = vcmp.eq.s32.totalorder %v272, 7
        %v629 = vsel %vm628, %v627, %v586
        %vm630 = vcmask 64512
        %v631 = vsel %vm630, %v629, -inf
        %632 = vmax.xlane.f32.xlu0 %v631
        %v633 = vpop.xlane.xlu0 %632
        %v634 = vsub.f32 %v629, %v633
        %v635 = vmul.f32 %v634, 1.442695
        %v636 = vpow.pop %v635
        %v637 = vsel %vm630, %v636, 0.0
        %638 = vadd.xlane.f32.xlu0 %v637
        %v639 = vpop.xlane.xlu0 %638
        %v640 = vrcp.pop %v639
        %v641 = vmul.f32 %v636, %v640
        %642 = vst.msk [vmem:[%s269] sm:$0xff] %vm630, %v641
        %v643 = vld [vmem:[%s230] sm:$0x1]
        %v644 = vld [vmem:[%s230 + $0x8] sm:$0x1]
        %v645 = vld [vmem:[%s230 + $0x10] sm:$0x1]
        %v646 = vld [vmem:[%s230 + $0x18] sm:$0x1]
        %v647 = vld [vmem:[%s230 + $0x20] sm:$0x1]
        %v648 = vld [vmem:[%s230 + $0x28] sm:$0x1]
        %v649 = vld [vmem:[%s230 + $0x30] sm:$0x1]
        %v650 = vld [vmem:[%s230 + $0x38] sm:$0x1]
        %v651 = vsel %vm327, %v641, 0.0
        %v652 = vsel %vm630, %v651, 0.0
        %653 = vadd.xlane.f32.xlu0 %v652
        %v654 = vpop.xlane.xlu0 %653
        %v663 = vrot.slane %v644, 7
        %v664 = vsel %vm304, %v663, %v643
        %v665 = vrot.slane %v645, 6
        %v666 = vsel %vm307, %v665, %v664
        %v667 = vrot.slane %v646, 5
        %v668 = vsel %vm310, %v667, %v666
        %v669 = vrot.slane %v647, 4
        %v670 = vsel %vm313, %v669, %v668
        %v671 = vrot.slane %v648, 3
        %v672 = vsel %vm316, %v671, %v670
        %v673 = vrot.slane %v649, 2
        %v674 = vsel %vm319, %v673, %v672
        %v675 = vrot.slane %v650, 1
        %v676 = vsel %vm322, %v675, %v674
        %v678 = vmul.f32 %v654, %v676
        %v679 = vadd.f32 %v678, 0.0
        %v680 = vld [vmem:[%s230 + $0x1] sm:$0x1]
        %v681 = vld [vmem:[%s230 + $0x9] sm:$0x1]
        %v682 = vld [vmem:[%s230 + $0x11] sm:$0x1]
        %v683 = vld [vmem:[%s230 + $0x19] sm:$0x1]
        %v684 = vld [vmem:[%s230 + $0x21] sm:$0x1]
        %v685 = vld [vmem:[%s230 + $0x29] sm:$0x1]
        %v686 = vld [vmem:[%s230 + $0x31] sm:$0x1]
        %v687 = vld [vmem:[%s230 + $0x39] sm:$0x1]
        %v688 = vsel %vm370, %v641, 0.0
        %v689 = vsel %vm630, %v688, 0.0
        %690 = vadd.xlane.f32.xlu0 %v689
        %v691 = vpop.xlane.xlu0 %690
        %v700 = vrot.slane %v681, 7
        %v701 = vsel %vm304, %v700, %v680
        %v702 = vrot.slane %v682, 6
        %v703 = vsel %vm307, %v702, %v701
        %v704 = vrot.slane %v683, 5
        %v705 = vsel %vm310, %v704, %v703
        %v706 = vrot.slane %v684, 4
        %v707 = vsel %vm313, %v706, %v705
        %v708 = vrot.slane %v685, 3
        %v709 = vsel %vm316, %v708, %v707
        %v710 = vrot.slane %v686, 2
        %v711 = vsel %vm319, %v710, %v709
        %v712 = vrot.slane %v687, 1
        %v713 = vsel %vm322, %v712, %v711
        %v715 = vmul.f32 %v691, %v713
        %v716 = vadd.f32 %v679, %v715
        %v717 = vld [vmem:[%s230 + $0x2] sm:$0x1]
        %v718 = vld [vmem:[%s230 + $0xa] sm:$0x1]
        %v719 = vld [vmem:[%s230 + $0x12] sm:$0x1]
        %v720 = vld [vmem:[%s230 + $0x1a] sm:$0x1]
        %v721 = vld [vmem:[%s230 + $0x22] sm:$0x1]
        %v722 = vld [vmem:[%s230 + $0x2a] sm:$0x1]
        %v723 = vld [vmem:[%s230 + $0x32] sm:$0x1]
        %v724 = vld [vmem:[%s230 + $0x3a] sm:$0x1]
        %v725 = vsel %vm413, %v641, 0.0
        %v726 = vsel %vm630, %v725, 0.0
        %727 = vadd.xlane.f32.xlu0 %v726
        %v728 = vpop.xlane.xlu0 %727
        %v737 = vrot.slane %v718, 7
        %v738 = vsel %vm304, %v737, %v717
        %v739 = vrot.slane %v719, 6
        %v740 = vsel %vm307, %v739, %v738
        %v741 = vrot.slane %v720, 5
        %v742 = vsel %vm310, %v741, %v740
        %v743 = vrot.slane %v721, 4
        %v744 = vsel %vm313, %v743, %v742
        %v745 = vrot.slane %v722, 3
        %v746 = vsel %vm316, %v745, %v744
        %v747 = vrot.slane %v723, 2
        %v748 = vsel %vm319, %v747, %v746
        %v749 = vrot.slane %v724, 1
        %v750 = vsel %vm322, %v749, %v748
        %v752 = vmul.f32 %v728, %v750
        %v753 = vadd.f32 %v716, %v752
        %v754 = vld [vmem:[%s230 + $0x3] sm:$0x1]
        %v755 = vld [vmem:[%s230 + $0xb] sm:$0x1]
        %v756 = vld [vmem:[%s230 + $0x13] sm:$0x1]
        %v757 = vld [vmem:[%s230 + $0x1b] sm:$0x1]
        %v758 = vld [vmem:[%s230 + $0x23] sm:$0x1]
        %v759 = vld [vmem:[%s230 + $0x2b] sm:$0x1]
        %v760 = vld [vmem:[%s230 + $0x33] sm:$0x1]
        %v761 = vld [vmem:[%s230 + $0x3b] sm:$0x1]
        %v762 = vsel %vm456, %v641, 0.0
        %v763 = vsel %vm630, %v762, 0.0
        %764 = vadd.xlane.f32.xlu0 %v763
        %v765 = vpop.xlane.xlu0 %764
        %v774 = vrot.slane %v755, 7
        %v775 = vsel %vm304, %v774, %v754
        %v776 = vrot.slane %v756, 6
        %v777 = vsel %vm307, %v776, %v775
        %v778 = vrot.slane %v757, 5
        %v779 = vsel %vm310, %v778, %v777
        %v780 = vrot.slane %v758, 4
        %v781 = vsel %vm313, %v780, %v779
        %v782 = vrot.slane %v759, 3
        %v783 = vsel %vm316, %v782, %v781
        %v784 = vrot.slane %v760, 2
        %v785 = vsel %vm319, %v784, %v783
        %v786 = vrot.slane %v761, 1
        %v787 = vsel %vm322, %v786, %v785
        %v789 = vmul.f32 %v765, %v787
        %v790 = vadd.f32 %v753, %v789
        %v791 = vld [vmem:[%s230 + $0x4] sm:$0x1]
        %v792 = vld [vmem:[%s230 + $0xc] sm:$0x1]
        %v793 = vld [vmem:[%s230 + $0x14] sm:$0x1]
        %v794 = vld [vmem:[%s230 + $0x1c] sm:$0x1]
        %v795 = vld [vmem:[%s230 + $0x24] sm:$0x1]
        %v796 = vld [vmem:[%s230 + $0x2c] sm:$0x1]
        %v797 = vld [vmem:[%s230 + $0x34] sm:$0x1]
        %v798 = vld [vmem:[%s230 + $0x3c] sm:$0x1]
        %v799 = vsel %vm499, %v641, 0.0
        %v800 = vsel %vm630, %v799, 0.0
        %801 = vadd.xlane.f32.xlu0 %v800
        %v802 = vpop.xlane.xlu0 %801
        %v811 = vrot.slane %v792, 7
        %v812 = vsel %vm304, %v811, %v791
        %v813 = vrot.slane %v793, 6
        %v814 = vsel %vm307, %v813, %v812
        %v815 = vrot.slane %v794, 5
        %v816 = vsel %vm310, %v815, %v814
        %v817 = vrot.slane %v795, 4
        %v818 = vsel %vm313, %v817, %v816
        %v819 = vrot.slane %v796, 3
        %v820 = vsel %vm316, %v819, %v818
        %v821 = vrot.slane %v797, 2
        %v822 = vsel %vm319, %v821, %v820
        %v823 = vrot.slane %v798, 1
        %v824 = vsel %vm322, %v823, %v822
        %v826 = vmul.f32 %v802, %v824
        %v827 = vadd.f32 %v790, %v826
        %v828 = vld [vmem:[%s230 + $0x5] sm:$0x1]
        %v829 = vld [vmem:[%s230 + $0xd] sm:$0x1]
        %v830 = vld [vmem:[%s230 + $0x15] sm:$0x1]
        %v831 = vld [vmem:[%s230 + $0x1d] sm:$0x1]
        %v832 = vld [vmem:[%s230 + $0x25] sm:$0x1]
        %v833 = vld [vmem:[%s230 + $0x2d] sm:$0x1]
        %v834 = vld [vmem:[%s230 + $0x35] sm:$0x1]
        %v835 = vld [vmem:[%s230 + $0x3d] sm:$0x1]
        %v836 = vsel %vm542, %v641, 0.0
        %v837 = vsel %vm630, %v836, 0.0
        %838 = vadd.xlane.f32.xlu0 %v837
        %v839 = vpop.xlane.xlu0 %838
        %v848 = vrot.slane %v829, 7
        %v849 = vsel %vm304, %v848, %v828
        %v850 = vrot.slane %v830, 6
        %v851 = vsel %vm307, %v850, %v849
        %v852 = vrot.slane %v831, 5
        %v853 = vsel %vm310, %v852, %v851
        %v854 = vrot.slane %v832, 4
        %v855 = vsel %vm313, %v854, %v853
        %v856 = vrot.slane %v833, 3
        %v857 = vsel %vm316, %v856, %v855
        %v858 = vrot.slane %v834, 2
        %v859 = vsel %vm319, %v858, %v857
        %v860 = vrot.slane %v835, 1
        %v861 = vsel %vm322, %v860, %v859
        %v863 = vmul.f32 %v839, %v861
        %v864 = vadd.f32 %v827, %v863
        %v865 = vld [vmem:[%s230 + $0x6] sm:$0x1]
        %v866 = vld [vmem:[%s230 + $0xe] sm:$0x1]
        %v867 = vld [vmem:[%s230 + $0x16] sm:$0x1]
        %v868 = vld [vmem:[%s230 + $0x1e] sm:$0x1]
        %v869 = vld [vmem:[%s230 + $0x26] sm:$0x1]
        %v870 = vld [vmem:[%s230 + $0x2e] sm:$0x1]
        %v871 = vld [vmem:[%s230 + $0x36] sm:$0x1]
        %v872 = vld [vmem:[%s230 + $0x3e] sm:$0x1]
        %v873 = vsel %vm585, %v641, 0.0
        %v874 = vsel %vm630, %v873, 0.0
        %875 = vadd.xlane.f32.xlu0 %v874
        %v876 = vpop.xlane.xlu0 %875
        %v885 = vrot.slane %v866, 7
        %v886 = vsel %vm304, %v885, %v865
        %v887 = vrot.slane %v867, 6
        %v888 = vsel %vm307, %v887, %v886
        %v889 = vrot.slane %v868, 5
        %v890 = vsel %vm310, %v889, %v888
        %v891 = vrot.slane %v869, 4
        %v892 = vsel %vm313, %v891, %v890
        %v893 = vrot.slane %v870, 3
        %v894 = vsel %vm316, %v893, %v892
        %v895 = vrot.slane %v871, 2
        %v896 = vsel %vm319, %v895, %v894
        %v897 = vrot.slane %v872, 1
        %v898 = vsel %vm322, %v897, %v896
        %v900 = vmul.f32 %v876, %v898
        %v901 = vadd.f32 %v864, %v900
        %v902 = vld [vmem:[%s230 + $0x7] sm:$0x1]
        %v903 = vld [vmem:[%s230 + $0xf] sm:$0x1]
        %v904 = vld [vmem:[%s230 + $0x17] sm:$0x1]
        %v905 = vld [vmem:[%s230 + $0x1f] sm:$0x1]
        %v906 = vld [vmem:[%s230 + $0x27] sm:$0x1]
        %v907 = vld [vmem:[%s230 + $0x2f] sm:$0x1]
        %v908 = vld [vmem:[%s230 + $0x37] sm:$0x1]
        %v909 = vld [vmem:[%s230 + $0x3f] sm:$0x1]
        %v910 = vsel %vm628, %v641, 0.0
        %v911 = vsel %vm630, %v910, 0.0
        %912 = vadd.xlane.f32.xlu0 %v911
        %v913 = vpop.xlane.xlu0 %912
        %v922 = vrot.slane %v903, 7
        %v923 = vsel %vm304, %v922, %v902
        %v924 = vrot.slane %v904, 6
        %v925 = vsel %vm307, %v924, %v923
        %v926 = vrot.slane %v905, 5
        %v927 = vsel %vm310, %v926, %v925
        %v928 = vrot.slane %v906, 4
        %v929 = vsel %vm313, %v928, %v927
        %v930 = vrot.slane %v907, 3
        %v931 = vsel %vm316, %v930, %v929
        %v932 = vrot.slane %v908, 2
        %v933 = vsel %vm319, %v932, %v931
        %v934 = vrot.slane %v909, 1
        %v935 = vsel %vm322, %v934, %v933
        %v937 = vmul.f32 %v913, %v935
        %v938 = vadd.f32 %v901, %v937
        %v939 = vld [vmem:[#allocation5] sm:$0xff]
        %v940 = vld [vmem:[#allocation5 + $0x8] sm:$0xff]
        %v941 = vld [vmem:[#allocation5 + $0x10] sm:$0xff]
        %v942 = vld [vmem:[#allocation5 + $0x18] sm:$0xff]
        %v943 = vld [vmem:[#allocation5 + $0x20] sm:$0xff]
        %v944 = vld [vmem:[#allocation5 + $0x28] sm:$0xff]
        %v945 = vld [vmem:[#allocation5 + $0x30] sm:$0xff]
        %v946 = vld [vmem:[#allocation5 + $0x38] sm:$0xff]
        %v947 = vld [vmem:[#allocation5 + $0x40] sm:$0xff]
        %v948 = vld [vmem:[#allocation5 + $0x48] sm:$0xff]
        %v949 = vld [vmem:[#allocation5 + $0x50] sm:$0xff]
        %v950 = vld [vmem:[#allocation5 + $0x58] sm:$0xff]
        %v951 = vld [vmem:[#allocation5 + $0x60] sm:$0xff]
        %v952 = vld [vmem:[#allocation5 + $0x68] sm:$0xff]
        %v953 = vld [vmem:[#allocation5 + $0x70] sm:$0xff]
        %v954 = vld [vmem:[#allocation5 + $0x78] sm:$0xff]
        %v955 = vld [vmem:[%s3] sm:$0x1]
        %v957 = vlaneseq
        %v958 = vshrl.u32 %v957, 7
        %v959 = vsub.s32 0, %v958
        %v960 = vrot.slane %v955, %v959
        %962 = vmatprep.subr.mxu0 0.0
        %963 = vmatpush1.xpose.msra.mxu0 %v954
        %964 = vmatprep.subr.mxu0 0.0
        %965 = vmatpush1.xpose.msra.mxu0 %v953
        %966 = vmatprep.subr.mxu0 0.0
        %967 = vmatpush1.xpose.msra.mxu0 %v952
        %968 = vmatprep.subr.mxu0 0.0
        %969 = vmatpush1.xpose.msra.mxu0 %v951
        %970 = vmatprep.subr.mxu0 0.0
        %971 = vmatpush1.xpose.msra.mxu0 %v950
        %972 = vmatprep.subr.mxu0 0.0
        %973 = vmatpush1.xpose.msra.mxu0 %v949
        %974 = vmatprep.subr.mxu0 0.0
        %975 = vmatpush1.xpose.msra.mxu0 %v948
        %976 = vmatprep.subr.mxu0 0.0
        %977 = vmatpush1.xpose.msra.mxu0 %v947
        %978 = vmatprep.subr.mxu0 0.0
        %979 = vmatpush1.xpose.msra.mxu0 %v946
        %980 = vmatprep.subr.mxu0 0.0
        %981 = vmatpush1.xpose.msra.mxu0 %v945
        %982 = vmatprep.subr.mxu0 0.0
        %983 = vmatpush1.xpose.msra.mxu0 %v944
        %984 = vmatprep.subr.mxu0 0.0
        %985 = vmatpush1.xpose.msra.mxu0 %v943
        %986 = vmatprep.subr.mxu0 0.0
        %987 = vmatpush1.xpose.msra.mxu0 %v942
        %988 = vmatprep.subr.mxu0 0.0
        %989 = vmatpush1.xpose.msra.mxu0 %v941
        %990 = vmatprep.subr.mxu0 0.0
        %991 = vmatpush1.xpose.msra.mxu0 %v940
        %992 = vmatprep.subr.mxu0 0.0
        %993 = vmatpush1.xpose.msra.mxu0 %v939
        %994 = vmatprep.subr.mxu0 0.0
        %995 = vmatpush2.xpose.msra.mxu0 0.0
        %996 = vmatprep.subr.mxu0 0.0
        %997 = vmatpush2.xpose.msra.mxu0 0.0
        %998 = vmatprep.subr.mxu0 0.0
        %999 = vmatpush2.xpose.msra.mxu0 0.0
        %1000 = vmatprep.subr.mxu0 0.0
        %1001 = vmatpush2.xpose.msra.mxu0 0.0
        %1002 = vmatprep.subr.mxu0 0.0
        %1003 = vmatpush2.xpose.msra.mxu0 0.0
        %1004 = vmatprep.subr.mxu0 0.0
        %1005 = vmatpush2.xpose.msra.mxu0 0.0
        %1006 = vmatprep.subr.mxu0 0.0
        %1007 = vmatpush2.xpose.msra.mxu0 0.0
        %1008 = vmatprep.subr.mxu0 0.0
        %1009 = vmatpush2.xpose.msra.mxu0 0.0
        %1010 = vmatprep.subr.mxu0 0.0
        %1011 = vmatpush2.xpose.msra.mxu0 0.0
        %1012 = vmatprep.subr.mxu0 0.0
        %1013 = vmatpush2.xpose.msra.mxu0 0.0
        %1014 = vmatprep.subr.mxu0 0.0
        %1015 = vmatpush2.xpose.msra.mxu0 0.0
        %1016 = vmatprep.subr.mxu0 0.0
        %1017 = vmatpush2.xpose.msra.mxu0 0.0
        %1018 = vmatprep.subr.mxu0 0.0
        %1019 = vmatpush2.xpose.msra.mxu0 0.0
        %1020 = vmatprep.subr.mxu0 0.0
        %1021 = vmatpush2.xpose.msra.mxu0 0.0
        %1022 = vmatprep.subr.mxu0 0.0
        %1023 = vmatpush2.xpose.msra.mxu0 0.0
        %1024 = vmatprep.subr.mxu0 0.0
        %1025 = vmatpush2.xpose.msra.mxu0 0.0
        %1026 = vmatprep.mubr.f32.mxu0 0.0
        %1027 = vmatmul.mubr.f32.gmra.mxu0 %v938
        %v1028 = vpop.f32.mrf.mxu0
        %v1029 = vadd.f32 %v960, %v1028
        %v1030 = vpop.f32.mrf.mxu0
        %1031 = vdwg.mxu0
        %1032 = vst [vmem:[%s258] sm:$0xff] %v1029
        %s1033 = sand.u32 %s121, 1
        %s1034 = scalar_lea.sflag [#allocation4], %s1033
        %s1035 = sand.u32 %s121, 1
        %s1036 = smul.addr %s1035, 8
        %s1037 = scalar_lea.vmem [#allocation7], %s1036
        %p1038 = scmp.lt.s32.totalorder %s24, 1
        %s1039 = scalar_select %p1038, %s24, 1
        %s1040 = smul.addr %s1039, 8
        %s1041 = scalar_lea.vmem %s5, %s1040
        // Predicated region
        $region45: #{tpu_custom_call.1} parent=35 // pred_check
          %p1042 = pneg %p131
        $region46: #{tpu_custom_call.1} parent=35 // pred_check_branch
          %1044 = sbr.rel (%p1042) target = $region48
        $region47: #{tpu_custom_call.1} parent=35 // pred_region
          %s1046 = ssub.s32 128, 128
          %1047 = vsyncadd %s1034, %s1046
          %s1048 = smul.addr %s24, 128
          %s1049 = scalar_lea.hbm %s4, %s1048
          %s1051 = sshll.u32 %s1037, 4
          %s1052 = int_to_ptr.vmem [resolvable:$true] %s1051
          %1054 = dma.vmem_to_hbm [thread:$0]  %s1052, 128, %s1049, %s1034
        $region48: #{tpu_custom_call.1} parent=35 // pred_fallthru
          _
        // Predicated region
        $region49: #{tpu_custom_call.1} parent=35 // pred_check
          %p1055 = pneg %p157
        $region50: #{tpu_custom_call.1} parent=35 // pred_check_branch
          %1057 = sbr.rel (%p1055) target = $region52
        $region51: #{tpu_custom_call.1} parent=35 // pred_region
          _
        $region52: #{tpu_custom_call.1} parent=35 // pred_fallthru
          _
      $region36: #{tpu_custom_call.1} parent=5 // pred_fallthru
        _
      %p1058 = scmp.le.s32.totalorder 2, %s19
      // Predicated region
      $region53: #{tpu_custom_call.1} parent=5 // pred_check
        %p1059 = pneg %p1058
      $region54: #{tpu_custom_call.1} parent=5 // pred_check_branch
        %1061 = sbr.rel (%p1059) target = $region56
      $region55: #{tpu_custom_call.1} parent=5 // pred_region
        %s1062 = ssub.s32 %s19, 2
        // Predicated region
        $region57: #{tpu_custom_call.1} parent=55 // pred_check
          %p1063 = pneg %p137
        $region58: #{tpu_custom_call.1} parent=55 // pred_check_branch
          %1065 = sbr.rel (%p1063) target = $region60
        $region59: #{tpu_custom_call.1} parent=55 // pred_region
          %s1066 = sand.u32 %s122, 1
          %s1067 = scalar_lea.sflag [#allocation4], %s1066
          %s1068 = sand.u32 %s122, 1
          %s1069 = smul.addr %s1068, 8
          %s1070 = scalar_lea.vmem [#allocation7], %s1069
          %1071 = dma.done %s1067, 128
        $region60: #{tpu_custom_call.1} parent=55 // pred_fallthru
          _
        // Predicated region
        $region61: #{tpu_custom_call.1} parent=55 // pred_check
          %p1072 = pneg %p163
        $region62: #{tpu_custom_call.1} parent=55 // pred_check_branch
          %1074 = sbr.rel (%p1072) target = $region64
        $region63: #{tpu_custom_call.1} parent=55 // pred_region
          %p1075 = scmp.lt.s32.totalorder %s25, 1
          %s1076 = scalar_select %p1075, %s25, 1
          %s1077 = smul.addr %s1076, 8
          %s1078 = scalar_lea.vmem %s5, %s1077
        $region64: #{tpu_custom_call.1} parent=55 // pred_fallthru
          _
      $region56: #{tpu_custom_call.1} parent=5 // pred_fallthru
        _
    $region6: #{tpu_custom_call.1} parent=1 // loop_footer
      %s23 = sadd.s32 1, %s19
    $region7: #{tpu_custom_call.1} parent=1 // loop_footer_branch
      %18 = sbr.rel target = $region3
    $region8: #{tpu_custom_call.1} parent=1 // loop_exit
      _
    %1079 = vsyncpa [#allocation3], 1
    %s1080 = scalar_lea.sflag [#allocation3], 1
    %1081 = vsyncpa %s1080, 1
    %1082 = vsyncpa [#allocation6], 1
    %1083 = vsyncpa [#allocation4], 1
    %s1084 = scalar_lea.sflag [#allocation4], 1
    %1085 = vsyncpa %s1084, 1

</llo_original>
